<compile_context>
chip_gen: v7x
topology: tpu7x:2x2x1
jax: 0.10.0
libtpu: 0.0.40
codegen_flags: <defaults>
</compile_context>

<pallas_src>
import numpy as np
import jax
import jax.numpy as jnp
from jax.experimental import pallas as pl
from jax.experimental.pallas import tpu as pltpu

LANE = 128      # lane width (last dim) of an f32 vreg
SUBLANE = 8     # sublane width (second-to-last dim) for f32
F32 = jnp.float32


def _ceil_to(x, m):
    return -(-x // m) * m


def _sigmoid(z):
    return 1.0 / (1.0 + jnp.exp(-z))


# ---------------------------------------------------------------------------
# Parameter init (PyTorch nn.Linear default: U(-1/sqrt(fan_in), 1/sqrt(fan_in)))
# ---------------------------------------------------------------------------
def _linear_init(key, fan_in, fan_out):
    kw, kb = jax.random.split(key)
    bound = 1.0 / (fan_in ** 0.5)
    w = jax.random.uniform(kw, (fan_out, fan_in), F32, -bound, bound)
    b = jax.random.uniform(kb, (fan_out,), F32, -bound, bound)
    return w, b


def init_dtox_raw_params(key, input_module_size, output_module_size, output_root_size):
    n = len(input_module_size)
    keys = jax.random.split(key, 2 * n + 1)
    raw = {"net": [], "aux": [], "out": None}
    for i in range(n):
        raw["net"].append(_linear_init(keys[2 * i],
                                       input_module_size[i], output_module_size[i]))
        raw["aux"].append(_linear_init(keys[2 * i + 1], output_module_size[i], 1))
    raw["out"] = _linear_init(keys[2 * n], output_root_size, 1)
    return raw


# ---------------------------------------------------------------------------
# One-time plan: topological levels, slab layout, pre-scattered weights.
# ---------------------------------------------------------------------------
def build_dtox_plan(raw, node_children, root_node, input_feature_size,
                    input_module_size, output_module_size, output_root_size):
    n_mod = len(input_module_size)
    combine = input_feature_size + n_mod
    F = input_feature_size
    F_p = _ceil_to(max(F, 1), LANE)

    # Greedy topological level grouping.  Children of module `scs` all have
    # index < scs, so consecutive modules whose children precede the level
    # start are mutually independent.
    levels, cur = [], []
    level_first_scs = input_feature_size
    for scs in range(input_feature_size, combine):
        children = node_children[scs]
        if cur and any(c >= level_first_scs for c in children):
            levels.append(cur)
            cur = []
            level_first_scs = scs
        cur.append(scs - input_feature_size)
    if cur:
        levels.append(cur)

    # Slab layout: [features (F_p) | level-1 block (padded to 128) | level-2 | ...]
    node_off = [None] * combine
    node_w = [None] * combine
    for i in range(F):
        node_off[i] = i
        node_w[i] = 1
    slab_cursor = F_p
    level_meta = []
    for lev in levels:
        S = slab_cursor
        off = 0
        local_off = {}
        for nid in lev:
            scs = F + nid
            node_off[scs] = S + off
            node_w[scs] = output_module_size[nid]
            local_off[nid] = off
            off += output_module_size[nid]
        Np = _ceil_to(off, LANE)
        level_meta.append({"S": S, "K": S, "N": off, "Np": Np,
                           "mods": list(lev), "local_off": local_off})
        slab_cursor += Np
    slab_width = slab_cursor

    # Pre-scattered per-level weights: one (K_L, N_L_p) matmul per level.
    w_levels = []
    for meta in level_meta:
        K, Np = meta["K"], meta["Np"]
        W = np.zeros((K, Np), np.float32)
        B = np.zeros((1, Np), np.float32)
        for nid in meta["mods"]:
            scs = F + nid
            w1 = np.asarray(raw["net"][nid][0])   # (m_out, m_in)
            b1 = np.asarray(raw["net"][nid][1])   # (m_out,)
            oo = meta["local_off"][nid]
            m_out = output_module_size[nid]
            B[0, oo:oo + m_out] = b1
            cursor = 0
            for c in node_children[scs]:
                co, cw = node_off[c], node_w[c]
                W[co:co + cw, oo:oo + m_out] = w1[:, cursor:cursor + cw].T
                cursor += cw
        w_levels.append((jnp.asarray(W), jnp.asarray(B)))

    # Packed aux heads + root head: one (slab_width, A_p) matmul, lane-dense.
    n_heads = n_mod + 1
    A_p = _ceil_to(n_heads, LANE)
    WA = np.zeros((slab_width, A_p), np.float32)
    BA = np.zeros((1, A_p), np.float32)
    for nid in range(n_mod):
        scs = F + nid
        w2 = np.asarray(raw["aux"][nid][0])       # (1, m_out)
        b2 = np.asarray(raw["aux"][nid][1])       # (1,)
        co, cw = node_off[scs], node_w[scs]
        WA[co:co + cw, nid] = w2[0, :]
        BA[0, nid] = b2[0]
    wo = np.asarray(raw["out"][0])                # (1, root_size)
    bo = np.asarray(raw["out"][1])                # (1,)
    assert output_root_size == sum(node_w[r] for r in root_node), \
        "output_root_size must equal the concatenated root width"
    cursor = 0
    for r in root_node:
        co, cw = node_off[r], node_w[r]
        WA[co:co + cw, n_mod] = wo[0, cursor:cursor + cw]
        cursor += cw
    BA[0, n_mod] = bo[0]

    return {"F": F, "F_p": F_p, "slab_width": slab_width, "A_p": A_p,
            "n_mod": n_mod, "level_meta": level_meta,
            "w_levels": w_levels, "WA": jnp.asarray(WA), "BA": jnp.asarray(BA)}


# ---------------------------------------------------------------------------
# Fused kernel: whole DAG + aux heads + root head per batch tile.
# ---------------------------------------------------------------------------
def _make_fused_kernel(level_meta, F_p, n_levels):
    def kernel(*refs):
        x_ref = refs[0]
        lvl_refs = refs[1:1 + 2 * n_levels]
        wA_ref = refs[1 + 2 * n_levels]
        bA_ref = refs[2 + 2 * n_levels]
        out_ref = refs[3 + 2 * n_levels]
        slab = refs[4 + 2 * n_levels]

        # Features land at the front of the resident VMEM activation slab.
        slab[:, :F_p] = x_ref[...]

        # One matmul per DAG level; each level's ReLU outputs (incl. zero pad
        # columns) are written back into its 128-aligned slab block, so every
        # later level / the head matmul reads a fully-initialized prefix.
        for li in range(n_levels):
            meta = level_meta[li]
            w = lvl_refs[2 * li][...]
            b = lvl_refs[2 * li + 1][...]
            xin = slab[:, :meta["K"]]
            y = jnp.dot(xin, w, preferred_element_type=jnp.float32) + b
            slab[:, meta["S"]:meta["S"] + meta["Np"]] = jnp.maximum(y, 0.0)

        # All auxiliary heads + root head in one lane-dense matmul + sigmoid.
        a = jnp.dot(slab[...], wA_ref[...], preferred_element_type=jnp.float32)
        out_ref[...] = _sigmoid(a + bA_ref[...])
    return kernel


def _pick_block_b(batch, slab_width, f_p, a_p, weight_bytes):
    """Largest batch tile (multiple of 8, <=1024) fitting a ~30 MiB VMEM budget."""
    b_pad = _ceil_to(batch, SUBLANE)
    per_row_bytes = 4 * (slab_width + 2 * (f_p + a_p))   # slab + dbl-buffered x/out
    budget = (30 << 20) - 2 * weight_bytes
    max_rows = max(SUBLANE, budget // max(per_row_bytes, 1))
    return max(SUBLANE, min(b_pad, 1024, (max_rows // SUBLANE) * SUBLANE))


def dtox_forward(x, plan):
    batch = x.shape[0]
    F, F_p = plan["F"], plan["F_p"]
    slab_width, A_p, n_mod = plan["slab_width"], plan["A_p"], plan["n_mod"]
    level_meta = plan["level_meta"]
    n_levels = len(level_meta)

    weight_bytes = 4 * sum(int(np.prod(w.shape)) + int(np.prod(b.shape))
                           for (w, b) in plan["w_levels"])
    weight_bytes += 4 * (int(np.prod(plan["WA"].shape)) + int(np.prod(plan["BA"].shape)))

    block_b = _pick_block_b(batch, slab_width, F_p, A_p, weight_bytes)
    batch_p = _ceil_to(batch, block_b)

    # Pad ONCE: batch -> batch_p, features -> F_p (lane-dense end to end).
    x_p = jnp.pad(x, ((0, batch_p - batch), (0, F_p - F)))

    in_specs = [pl.BlockSpec((block_b, F_p), lambda i: (i, 0))]
    operands = [x_p]
    for (w, b), meta in zip(plan["w_levels"], level_meta):
        in_specs.append(pl.BlockSpec((meta["K"], meta["Np"]), lambda i: (0, 0)))
        in_specs.append(pl.BlockSpec((1, meta["Np"]), lambda i: (0, 0)))
        operands += [w, b]
    in_specs.append(pl.BlockSpec((slab_width, A_p), lambda i: (0, 0)))
    in_specs.append(pl.BlockSpec((1, A_p), lambda i: (0, 0)))
    operands += [plan["WA"], plan["BA"]]

    need_bytes = 2 * weight_bytes + block_b * 4 * (slab_width + 2 * (F_p + A_p))
    vmem_limit = int(min(40 << 20, max(16 << 20, int(need_bytes * 1.5))))

    packed = pl.pallas_call(
        _make_fused_kernel(level_meta, F_p, n_levels),
        out_shape=jax.ShapeDtypeStruct((batch_p, A_p), F32),
        grid=(batch_p // block_b,),
        in_specs=in_specs,
        out_specs=pl.BlockSpec((block_b, A_p), lambda i: (i, 0)),
        scratch_shapes=[pltpu.VMEM((block_b, slab_width), F32)],
        compiler_params=pltpu.CompilerParams(
            dimension_semantics=("parallel",),
            vmem_limit_bytes=vmem_limit,
        ),
    )(*operands)

    packed = packed[:batch]                         # only final-output slice
    y_pred = packed[:, n_mod:n_mod + 1]
    aux = [packed[:, j:j + 1] for j in range(n_mod)]
    return y_pred, aux


# ---------------------------------------------------------------------------
# Pure-JAX reference mirroring the PyTorch forward exactly.
# ---------------------------------------------------------------------------
def dtox_forward_ref(x, raw, node_children, root_node, input_feature_size,
                     input_module_size):
    hidden = len(input_module_size)
    combine = input_feature_size + hidden
    layer_result = [None] * combine
    aux_result = [None] * hidden
    for sis in range(input_feature_size):
        layer_result[sis] = x[:, sis:sis + 1]
    for scs in range(input_feature_size, combine):
        children = node_children[scs]
        child_out = jnp.concatenate([layer_result[c] for c in children], axis=1)
        nid = scs - input_feature_size
        w1, b1 = raw["net"][nid]
        y = jnp.maximum(child_out @ w1.T + b1, 0.0)
        layer_result[scs] = y
        w2, b2 = raw["aux"][nid]
        aux_result[nid] = _sigmoid(y @ w2.T + b2)
    root_in = jnp.concatenate([layer_result[r] for r in root_node], axis=1)
    wo, bo = raw["out"]
    y_pred = _sigmoid(root_in @ wo.T + bo)
    return y_pred, aux_result


if __name__ == "__main__":
    # Small hierarchy consistent with DToxNet: 8 input features, 3 modules.
    #   node 8  <- features [0,1,2,3]   Linear(4 -> 16)  + ReLU  (+ aux sigmoid)
    #   node 9  <- features [4,5,6,7]   Linear(4 -> 16)  + ReLU  (+ aux sigmoid)
    #   node 10 <- modules  [8, 9]      Linear(32 -> 32) + ReLU  (+ aux sigmoid)
    #   root output <- node 10          Linear(32 -> 1)  + Sigmoid
    batch = 8
    input_feature_size = 8
    input_module_size = [4, 4, 32]
    output_module_size = [16, 16, 32]
    node_children = {8: [0, 1, 2, 3], 9: [4, 5, 6, 7], 10: [8, 9]}
    root_node = [10]
    output_root_size = 32

    key = jax.random.PRNGKey(0)
    kx, kp = jax.random.split(key)
    x = jax.random.normal(kx, (batch, input_feature_size), dtype=F32)
    raw = init_dtox_raw_params(kp, input_module_size, output_module_size,
                               output_root_size)
    plan = build_dtox_plan(raw, node_children, root_node, input_feature_size,
                           input_module_size, output_module_size, output_root_size)

    y_pred, aux = dtox_forward(x, plan)
    y_pred = jax.block_until_ready(y_pred)
    aux = [jax.block_until_ready(a) for a in aux]

    y_ref, aux_ref = dtox_forward_ref(x, raw, node_children, root_node,
                                      input_feature_size, input_module_size)

    assert y_pred.shape == (batch, 1)
    assert jnp.allclose(y_pred, y_ref, atol=1e-5, rtol=1e-5), "root output mismatch"
    for got, ref in zip(aux, aux_ref):
        assert got.shape == (batch, 1)
        assert jnp.allclose(got, ref, atol=1e-5, rtol=1e-5), "auxiliary mismatch"

    print("KERNEL_OK")
</pallas_src>

<mosaic_0001>
module attributes {stable_mosaic.version = 11 : i64} {
  func.func @kernel(%arg0: i32, %arg1: memref<8x128xf32, #tpu.memory_space<vmem>>, %arg2: memref<128x128xf32, #tpu.memory_space<vmem>>, %arg3: memref<1x128xf32, #tpu.memory_space<vmem>>, %arg4: memref<256x128xf32, #tpu.memory_space<vmem>>, %arg5: memref<1x128xf32, #tpu.memory_space<vmem>>, %arg6: memref<384x128xf32, #tpu.memory_space<vmem>>, %arg7: memref<1x128xf32, #tpu.memory_space<vmem>>, %arg8: memref<8x128xf32, #tpu.memory_space<vmem>>, %arg9: memref<8x384xf32, #tpu.memory_space<vmem>>) attributes {dimension_semantics = [#tpu.dimension_semantics<parallel>], iteration_bounds = array<i64: 1>, scalar_prefetch = 0 : i64, scratch_operands = 1 : i64, tpu.core_type = #tpu.core_type<tc>, window_params = [{transform_indices = @transform_0, window_bounds = array<i64: 8, 128>}, {pipeline_mode = #tpu.pipeline_mode<synchronous>, transform_indices = @transform_1, window_bounds = array<i64: 128, 128>}, {pipeline_mode = #tpu.pipeline_mode<synchronous>, transform_indices = @transform_2, window_bounds = array<i64: 1, 128>}, {pipeline_mode = #tpu.pipeline_mode<synchronous>, transform_indices = @transform_3, window_bounds = array<i64: 256, 128>}, {pipeline_mode = #tpu.pipeline_mode<synchronous>, transform_indices = @transform_4, window_bounds = array<i64: 1, 128>}, {pipeline_mode = #tpu.pipeline_mode<synchronous>, transform_indices = @transform_5, window_bounds = array<i64: 384, 128>}, {pipeline_mode = #tpu.pipeline_mode<synchronous>, transform_indices = @transform_6, window_bounds = array<i64: 1, 128>}, {transform_indices = @transform_7, window_bounds = array<i64: 8, 128>}]} {
    %c0 = arith.constant 0 : index
    %c0_0 = arith.constant 0 : index
    %0 = vector.load %arg1[%c0, %c0_0] : memref<8x128xf32, #tpu.memory_space<vmem>>, vector<8x128xf32>
    %c0_1 = arith.constant 0 : index
    %c0_2 = arith.constant 0 : index
    %1 = vector.load %arg9[%c0_1, %c0_2] : memref<8x384xf32, #tpu.memory_space<vmem>>, vector<8x128xf32>
    tpu.vector_store %arg9[%c0_1, %c0_2], %0 {strides = array<i32>} : memref<8x384xf32, #tpu.memory_space<vmem>>, vector<8x128xf32>,
    %c0_3 = arith.constant 0 : index
    %c0_4 = arith.constant 0 : index
    %2 = vector.load %arg2[%c0_3, %c0_4] : memref<128x128xf32, #tpu.memory_space<vmem>>, vector<128x128xf32>
    %c0_5 = arith.constant 0 : index
    %c0_6 = arith.constant 0 : index
    %3 = vector.load %arg3[%c0_5, %c0_6] : memref<1x128xf32, #tpu.memory_space<vmem>>, vector<1x128xf32>
    %c0_7 = arith.constant 0 : index
    %c0_8 = arith.constant 0 : index
    %4 = vector.load %arg9[%c0_7, %c0_8] : memref<8x384xf32, #tpu.memory_space<vmem>>, vector<8x128xf32>
    %cst = arith.constant dense<0.000000e+00> : vector<8x128xf32>
    %5 = tpu.matmul %4, %2, %cst {dimension_numbers = #tpu.dot_dimension_numbers<[1], [0], [0], [1], [0, 0, 1, 1], [], []>} : vector<8x128xf32>, vector<128x128xf32>, vector<8x128xf32> -> vector<8x128xf32>
    %6 = vector.broadcast %3 : vector<1x128xf32> to vector<8x128xf32>
    %7 = arith.addf %5, %6 : vector<8x128xf32>
    %cst_9 = arith.constant 0.000000e+00 : f32
    %8 = vector.broadcast %cst_9 : f32 to vector<8x128xf32>
    %9 = arith.maximumf %7, %8 : vector<8x128xf32>
    %c0_10 = arith.constant 0 : index
    %c128 = arith.constant 128 : index
    %10 = vector.load %arg9[%c0_10, %c128] : memref<8x384xf32, #tpu.memory_space<vmem>>, vector<8x128xf32>
    tpu.vector_store %arg9[%c0_10, %c128], %9 {strides = array<i32>} : memref<8x384xf32, #tpu.memory_space<vmem>>, vector<8x128xf32>,
    %c0_11 = arith.constant 0 : index
    %c0_12 = arith.constant 0 : index
    %11 = vector.load %arg4[%c0_11, %c0_12] : memref<256x128xf32, #tpu.memory_space<vmem>>, vector<256x128xf32>
    %c0_13 = arith.constant 0 : index
    %c0_14 = arith.constant 0 : index
    %12 = vector.load %arg5[%c0_13, %c0_14] : memref<1x128xf32, #tpu.memory_space<vmem>>, vector<1x128xf32>
    %c0_15 = arith.constant 0 : index
    %c0_16 = arith.constant 0 : index
    %13 = vector.load %arg9[%c0_15, %c0_16] : memref<8x384xf32, #tpu.memory_space<vmem>>, vector<8x256xf32>
    %cst_17 = arith.constant dense<0.000000e+00> : vector<8x128xf32>
    %14 = tpu.matmul %13, %11, %cst_17 {dimension_numbers = #tpu.dot_dimension_numbers<[1], [0], [0], [1], [0, 0, 1, 1], [], []>} : vector<8x256xf32>, vector<256x128xf32>, vector<8x128xf32> -> vector<8x128xf32>
    %15 = vector.broadcast %12 : vector<1x128xf32> to vector<8x128xf32>
    %16 = arith.addf %14, %15 : vector<8x128xf32>
    %cst_18 = arith.constant 0.000000e+00 : f32
    %17 = vector.broadcast %cst_18 : f32 to vector<8x128xf32>
    %18 = arith.maximumf %16, %17 : vector<8x128xf32>
    %c0_19 = arith.constant 0 : index
    %c256 = arith.constant 256 : index
    %19 = vector.load %arg9[%c0_19, %c256] : memref<8x384xf32, #tpu.memory_space<vmem>>, vector<8x128xf32>
    tpu.vector_store %arg9[%c0_19, %c256], %18 {strides = array<i32>} : memref<8x384xf32, #tpu.memory_space<vmem>>, vector<8x128xf32>,
    %c0_20 = arith.constant 0 : index
    %c0_21 = arith.constant 0 : index
    %20 = vector.load %arg9[%c0_20, %c0_21] : memref<8x384xf32, #tpu.memory_space<vmem>>, vector<8x384xf32>
    %c0_22 = arith.constant 0 : index
    %c0_23 = arith.constant 0 : index
    %21 = vector.load %arg6[%c0_22, %c0_23] : memref<384x128xf32, #tpu.memory_space<vmem>>, vector<384x128xf32>
    %cst_24 = arith.constant dense<0.000000e+00> : vector<8x128xf32>
    %22 = tpu.matmul %20, %21, %cst_24 {dimension_numbers = #tpu.dot_dimension_numbers<[1], [0], [0], [1], [0, 0, 1, 1], [], []>} : vector<8x384xf32>, vector<384x128xf32>, vector<8x128xf32> -> vector<8x128xf32>
    %c0_25 = arith.constant 0 : index
    %c0_26 = arith.constant 0 : index
    %23 = vector.load %arg7[%c0_25, %c0_26] : memref<1x128xf32, #tpu.memory_space<vmem>>, vector<1x128xf32>
    %24 = vector.broadcast %23 : vector<1x128xf32> to vector<8x128xf32>
    %25 = arith.addf %22, %24 : vector<8x128xf32>
    %cst_27 = arith.constant 0.000000e+00 : f32
    %26 = vector.broadcast %cst_27 : f32 to vector<8x128xf32>
    %27 = arith.subf %26, %25 : vector<8x128xf32>
    %28 = math.exp %27 : vector<8x128xf32>
    %cst_28 = arith.constant 1.000000e+00 : f32
    %29 = vector.broadcast %cst_28 : f32 to vector<8x128xf32>
    %30 = arith.addf %29, %28 : vector<8x128xf32>
    %cst_29 = arith.constant 1.000000e+00 : f32
    %31 = vector.broadcast %cst_29 : f32 to vector<8x128xf32>
    %32 = arith.divf %31, %30 : vector<8x128xf32>
    %c0_30 = arith.constant 0 : index
    %c0_31 = arith.constant 0 : index
    %33 = vector.load %arg8[%c0_30, %c0_31] : memref<8x128xf32, #tpu.memory_space<vmem>>, vector<8x128xf32>
    tpu.vector_store %arg8[%c0_30, %c0_31], %32 {strides = array<i32>} : memref<8x128xf32, #tpu.memory_space<vmem>>, vector<8x128xf32>,
    return
  }
  func.func @transform_0(%arg0: i32) -> (i32, i32) {
    %c0_i32 = arith.constant 0 : i32
    %c0_i32_0 = arith.constant 0 : i32
    return %arg0, %c0_i32 : i32, i32
  }
  func.func @transform_1(%arg0: i32) -> (i32, i32) {
    %c0_i32 = arith.constant 0 : i32
    %c0_i32_0 = arith.constant 0 : i32
    %c0_i32_1 = arith.constant 0 : i32
    return %c0_i32, %c0_i32_0 : i32, i32
  }
  func.func @transform_2(%arg0: i32) -> (i32, i32) {
    %c0_i32 = arith.constant 0 : i32
    %c0_i32_0 = arith.constant 0 : i32
    %c0_i32_1 = arith.constant 0 : i32
    return %c0_i32, %c0_i32_0 : i32, i32
  }
  func.func @transform_3(%arg0: i32) -> (i32, i32) {
    %c0_i32 = arith.constant 0 : i32
    %c0_i32_0 = arith.constant 0 : i32
    %c0_i32_1 = arith.constant 0 : i32
    return %c0_i32, %c0_i32_0 : i32, i32
  }
  func.func @transform_4(%arg0: i32) -> (i32, i32) {
    %c0_i32 = arith.constant 0 : i32
    %c0_i32_0 = arith.constant 0 : i32
    %c0_i32_1 = arith.constant 0 : i32
    return %c0_i32, %c0_i32_0 : i32, i32
  }
  func.func @transform_5(%arg0: i32) -> (i32, i32) {
    %c0_i32 = arith.constant 0 : i32
    %c0_i32_0 = arith.constant 0 : i32
    %c0_i32_1 = arith.constant 0 : i32
    return %c0_i32, %c0_i32_0 : i32, i32
  }
  func.func @transform_6(%arg0: i32) -> (i32, i32) {
    %c0_i32 = arith.constant 0 : i32
    %c0_i32_0 = arith.constant 0 : i32
    %c0_i32_1 = arith.constant 0 : i32
    return %c0_i32, %c0_i32_0 : i32, i32
  }
  func.func @transform_7(%arg0: i32) -> (i32, i32) {
    %c0_i32 = arith.constant 0 : i32
    %c0_i32_0 = arith.constant 0 : i32
    return %arg0, %c0_i32 : i32, i32
  }
}

</mosaic_0001>

<llo_original>
// kernel: tpu_custom_call.1
$region0: #{tpu_custom_call.1}
  #allocation0 [shape = 'u32[]', space=smem, size = 0x4, offset = 0x4, fixed_abs, tag = 'smem constant byte address 0x4 - core index']
  #allocation1 [shape = 'u32[144,128]{1,0:T(1,128)}', space=vmem, size = 0x12000, scoped, tag = 'internal scratch']
  #allocation2 [shape = 'f32[8,384]{1,0:T(8,128)}', space=vmem, size = 0x3000, scoped, tag = 'scratch operand']
  %s0 = inlined_call_operand.hbm [shape: f32[8,128], index: 0, kind: input, shape index: {}]
  %s1 = inlined_call_operand.hbm [shape: f32[128,128], index: 1, kind: input, shape index: {}]
  %s2 = inlined_call_operand.vmem [shape: f32[1,128], index: 2, kind: input, shape index: {}]
  %s3 = inlined_call_operand.hbm [shape: f32[256,128], index: 3, kind: input, shape index: {}]
  %s4 = inlined_call_operand.vmem [shape: f32[1,128], index: 4, kind: input, shape index: {}]
  %s5 = inlined_call_operand.hbm [shape: f32[384,128], index: 5, kind: input, shape index: {}]
  %s6 = inlined_call_operand.vmem [shape: f32[1,128], index: 6, kind: input, shape index: {}]
  %s7 = inlined_call_operand.hbm [shape: f32[8,128], index: 7, kind: output, shape index: {}]
  %s8 = sld [smem:[#allocation0]]
  $region54: #{tpu_custom_call.1} parent=0
    _
  %s10 = ssub.s32 1, %s8
  %s11 = scalar_select 0, %s10, %s8
  $region1: #{tpu_custom_call.1} parent=0
    #allocation3 [shape = 'u8[4096]{0}', space=vmem, size = 0x1000, scoped, tag = 'input window, operand 0, single buffered']
    #allocation4 [shape = 's32[1]{0}', space=sflag, size = 0x4, scoped, tag = 'scoped memory for tpu_custom_call.1']
    #allocation5 [shape = 's32[1]{0}', space=sflag, size = 0x4, scoped, tag = 'scoped memory for tpu_custom_call.1']
    #allocation6 [shape = 'u8[65536]{0}', space=vmem, size = 0x10000, scoped, tag = 'input window, operand 1, single buffered']
    #allocation7 [shape = 's32[1]{0}', space=sflag, size = 0x4, scoped, tag = 'scoped memory for tpu_custom_call.1']
    #allocation8 [shape = 'u8[131072]{0}', space=vmem, size = 0x20000, scoped, tag = 'input window, operand 3, single buffered']
    #allocation9 [shape = 'u8[196608]{0}', space=vmem, size = 0x30000, scoped, tag = 'input window, operand 5, single buffered']
    #allocation10 [shape = 's32[1]{0}', space=sflag, size = 0x4, scoped, tag = 'scoped memory for tpu_custom_call.1']
    #allocation11 [shape = 'u8[4096]{0}', space=vmem, size = 0x1000, scoped, tag = 'output window, operand 0, single buffered']
    %12 = vsyncpa [#allocation4], 0
    %13 = vsyncpa [#allocation7], 0
    %14 = vsyncpa [#allocation10], 0
    %15 = vsyncpa [#allocation5], 0
    // Predicated region
    $region2: #{tpu_custom_call.1} parent=1 // pred_check
      _
    $region3: #{tpu_custom_call.1} parent=1 // pred_check_branch
      %17 = sbr.rel (0) target = $region5
    $region4: #{tpu_custom_call.1} parent=1 // pred_region
      %s19 = ssub.s32 128, 128
      %20 = vsyncadd [#allocation4], %s19
      %s22 = sshll.u32 [#allocation3], 4
      %s23 = int_to_ptr.vmem [resolvable:$true] %s22
      %25 = dma.hbm_to_vmem [thread:$0]  %s0, 128, %s23, [#allocation4]
    $region5: #{tpu_custom_call.1} parent=1 // pred_fallthru
      _
    // Predicated region
    $region6: #{tpu_custom_call.1} parent=1 // pred_check
      _
    $region7: #{tpu_custom_call.1} parent=1 // pred_check_branch
      %27 = sbr.rel (0) target = $region9
    $region8: #{tpu_custom_call.1} parent=1 // pred_region
      %s29 = ssub.s32 2048, 2048
      %30 = vsyncadd [#allocation7], %s29
      %s31 = sshll.u32 [#allocation6], 4
      %s32 = int_to_ptr.vmem [resolvable:$true] %s31
      %37 = dma.hbm_to_vmem [thread:$0]  %s1, 2048, %s32, [#allocation7], 128, 128, 8
    $region9: #{tpu_custom_call.1} parent=1 // pred_fallthru
      _
    // Predicated region
    $region10: #{tpu_custom_call.1} parent=1 // pred_check
      _
    $region11: #{tpu_custom_call.1} parent=1 // pred_check_branch
      %39 = sbr.rel (0) target = $region13
    $region12: #{tpu_custom_call.1} parent=1 // pred_region
      _
    $region13: #{tpu_custom_call.1} parent=1 // pred_fallthru
      _
    // Predicated region
    $region14: #{tpu_custom_call.1} parent=1 // pred_check
      _
    $region15: #{tpu_custom_call.1} parent=1 // pred_check_branch
      %41 = sbr.rel (0) target = $region17
    $region16: #{tpu_custom_call.1} parent=1 // pred_region
      %s43 = ssub.s32 4096, 4096
      %44 = vsyncadd [#allocation7], %s43
      %s45 = sshll.u32 [#allocation8], 4
      %s46 = int_to_ptr.vmem [resolvable:$true] %s45
      %51 = dma.hbm_to_vmem [thread:$0]  %s3, 4096, %s46, [#allocation7], 128, 128, 8
    $region17: #{tpu_custom_call.1} parent=1 // pred_fallthru
      _
    // Predicated region
    $region18: #{tpu_custom_call.1} parent=1 // pred_check
      _
    $region19: #{tpu_custom_call.1} parent=1 // pred_check_branch
      %53 = sbr.rel (0) target = $region21
    $region20: #{tpu_custom_call.1} parent=1 // pred_region
      _
    $region21: #{tpu_custom_call.1} parent=1 // pred_fallthru
      _
    // Predicated region
    $region22: #{tpu_custom_call.1} parent=1 // pred_check
      _
    $region23: #{tpu_custom_call.1} parent=1 // pred_check_branch
      %55 = sbr.rel (0) target = $region25
    $region24: #{tpu_custom_call.1} parent=1 // pred_region
      %s57 = ssub.s32 6144, 6144
      %58 = vsyncadd [#allocation10], %s57
      %s59 = sshll.u32 [#allocation9], 4
      %s60 = int_to_ptr.vmem [resolvable:$true] %s59
      %65 = dma.hbm_to_vmem [thread:$0]  %s5, 6144, %s60, [#allocation10], 128, 128, 8
    $region25: #{tpu_custom_call.1} parent=1 // pred_fallthru
      _
    // Predicated region
    $region26: #{tpu_custom_call.1} parent=1 // pred_check
      _
    $region27: #{tpu_custom_call.1} parent=1 // pred_check_branch
      %67 = sbr.rel (0) target = $region29
    $region28: #{tpu_custom_call.1} parent=1 // pred_region
      _
    $region29: #{tpu_custom_call.1} parent=1 // pred_fallthru
      _
    // Predicated region
    $region30: #{tpu_custom_call.1} parent=1 // pred_check
      _
    $region31: #{tpu_custom_call.1} parent=1 // pred_check_branch
      %69 = sbr.rel (0) target = $region33
    $region32: #{tpu_custom_call.1} parent=1 // pred_region
      %70 = dma.done [#allocation4], 128
    $region33: #{tpu_custom_call.1} parent=1 // pred_fallthru
      _
    // Predicated region
    $region34: #{tpu_custom_call.1} parent=1 // pred_check
      _
    $region35: #{tpu_custom_call.1} parent=1 // pred_check_branch
      %72 = sbr.rel (0) target = $region37
    $region36: #{tpu_custom_call.1} parent=1 // pred_region
      %73 = dma.done [#allocation7], 2048
    $region37: #{tpu_custom_call.1} parent=1 // pred_fallthru
      _
    // Predicated region
    $region38: #{tpu_custom_call.1} parent=1 // pred_check
      _
    $region39: #{tpu_custom_call.1} parent=1 // pred_check_branch
      %75 = sbr.rel (0) target = $region41
    $region40: #{tpu_custom_call.1} parent=1 // pred_region
      %76 = dma.done [#allocation7], 4096
    $region41: #{tpu_custom_call.1} parent=1 // pred_fallthru
      _
    // Predicated region
    $region42: #{tpu_custom_call.1} parent=1 // pred_check
      _
    $region43: #{tpu_custom_call.1} parent=1 // pred_check_branch
      %78 = sbr.rel (0) target = $region45
    $region44: #{tpu_custom_call.1} parent=1 // pred_region
      %79 = dma.done [#allocation10], 6144
    $region45: #{tpu_custom_call.1} parent=1 // pred_fallthru
      _
    %v80 = vld [vmem:[#allocation3] sm:$0xff]
    %81 = vst [vmem:[#allocation2] sm:$0xff] %v80
    %v82 = vld [vmem:[#allocation6] sm:$0xff]
    %v83 = vld [vmem:[#allocation6 + $0x8] sm:$0xff]
    %v84 = vld [vmem:[#allocation6 + $0x10] sm:$0xff]
    %v85 = vld [vmem:[#allocation6 + $0x18] sm:$0xff]
    %v86 = vld [vmem:[#allocation6 + $0x20] sm:$0xff]
    %v87 = vld [vmem:[#allocation6 + $0x28] sm:$0xff]
    %v88 = vld [vmem:[#allocation6 + $0x30] sm:$0xff]
    %v89 = vld [vmem:[#allocation6 + $0x38] sm:$0xff]
    %v90 = vld [vmem:[#allocation6 + $0x40] sm:$0xff]
    %v91 = vld [vmem:[#allocation6 + $0x48] sm:$0xff]
    %v92 = vld [vmem:[#allocation6 + $0x50] sm:$0xff]
    %v93 = vld [vmem:[#allocation6 + $0x58] sm:$0xff]
    %v94 = vld [vmem:[#allocation6 + $0x60] sm:$0xff]
    %v95 = vld [vmem:[#allocation6 + $0x68] sm:$0xff]
    %v96 = vld [vmem:[#allocation6 + $0x70] sm:$0xff]
    %v97 = vld [vmem:[#allocation6 + $0x78] sm:$0xff]
    %v98 = vld [vmem:[%s2] sm:$0x1]
    %v99 = vld [vmem:[#allocation2] sm:$0xff]
    %v101 = vlaneseq
    %v102 = vshrl.u32 %v101, 7
    %v103 = vsub.s32 0, %v102
    %v104 = vrot.slane %v98, %v103
    %106 = vmatprep.subr.mxu0 0.0
    %107 = vmatpush1.msra.mxu0 %v82
    %108 = vmatprep.subr.mxu0 0.0
    %109 = vmatpush1.msra.mxu0 %v83
    %110 = vmatprep.subr.mxu0 0.0
    %111 = vmatpush1.msra.mxu0 %v84
    %112 = vmatprep.subr.mxu0 0.0
    %113 = vmatpush1.msra.mxu0 %v85
    %114 = vmatprep.subr.mxu0 0.0
    %115 = vmatpush1.msra.mxu0 %v86
    %116 = vmatprep.subr.mxu0 0.0
    %117 = vmatpush1.msra.mxu0 %v87
    %118 = vmatprep.subr.mxu0 0.0
    %119 = vmatpush1.msra.mxu0 %v88
    %120 = vmatprep.subr.mxu0 0.0
    %121 = vmatpush1.msra.mxu0 %v89
    %122 = vmatprep.subr.mxu0 0.0
    %123 = vmatpush1.msra.mxu0 %v90
    %124 = vmatprep.subr.mxu0 0.0
    %125 = vmatpush1.msra.mxu0 %v91
    %126 = vmatprep.subr.mxu0 0.0
    %127 = vmatpush1.msra.mxu0 %v92
    %128 = vmatprep.subr.mxu0 0.0
    %129 = vmatpush1.msra.mxu0 %v93
    %130 = vmatprep.subr.mxu0 0.0
    %131 = vmatpush1.msra.mxu0 %v94
    %132 = vmatprep.subr.mxu0 0.0
    %133 = vmatpush1.msra.mxu0 %v95
    %134 = vmatprep.subr.mxu0 0.0
    %135 = vmatpush1.msra.mxu0 %v96
    %136 = vmatprep.subr.mxu0 0.0
    %137 = vmatpush1.msra.mxu0 %v97
    %138 = vmatprep.subr.mxu0 0.0
    %139 = vmatpush1.msra.mxu0 0.0
    %140 = vmatprep.subr.mxu0 0.0
    %141 = vmatpush1.msra.mxu0 0.0
    %142 = vmatprep.subr.mxu0 0.0
    %143 = vmatpush1.msra.mxu0 0.0
    %144 = vmatprep.subr.mxu0 0.0
    %145 = vmatpush1.msra.mxu0 0.0
    %146 = vmatprep.subr.mxu0 0.0
    %147 = vmatpush1.msra.mxu0 0.0
    %148 = vmatprep.subr.mxu0 0.0
    %149 = vmatpush1.msra.mxu0 0.0
    %150 = vmatprep.subr.mxu0 0.0
    %151 = vmatpush1.msra.mxu0 0.0
    %152 = vmatprep.subr.mxu0 0.0
    %153 = vmatpush1.msra.mxu0 0.0
    %154 = vmatprep.subr.mxu0 0.0
    %155 = vmatpush1.msra.mxu0 0.0
    %156 = vmatprep.subr.mxu0 0.0
    %157 = vmatpush1.msra.mxu0 0.0
    %158 = vmatprep.subr.mxu0 0.0
    %159 = vmatpush1.msra.mxu0 0.0
    %160 = vmatprep.subr.mxu0 0.0
    %161 = vmatpush1.msra.mxu0 0.0
    %162 = vmatprep.subr.mxu0 0.0
    %163 = vmatpush1.msra.mxu0 0.0
    %164 = vmatprep.subr.mxu0 0.0
    %165 = vmatpush1.msra.mxu0 0.0
    %166 = vmatprep.subr.mxu0 0.0
    %167 = vmatpush1.msra.mxu0 0.0
    %168 = vmatprep.subr.mxu0 0.0
    %169 = vmatpush1.msra.mxu0 0.0
    %170 = vmatprep.mubr.f32.mxu0 0.0
    %171 = vmatmul.mubr.f32.gmra.mrb[0].mxu0 %v99
    %v172 = vpop.f32.mrb[0].mxu0
    %v173 = vadd.f32 %v104, %v172
    %v174 = vpop.f32.mrb[0].mxu0
    %175 = vdwg.mxu0
    %v176 = vmax.f32 %v173, 0.0
    %177 = vst [vmem:[#allocation2 + $0x8] sm:$0xff] %v176
    %v178 = vld [vmem:[#allocation8] sm:$0xff]
    %v179 = vld [vmem:[#allocation8 + $0x8] sm:$0xff]
    %v180 = vld [vmem:[#allocation8 + $0x10] sm:$0xff]
    %v181 = vld [vmem:[#allocation8 + $0x18] sm:$0xff]
    %v182 = vld [vmem:[#allocation8 + $0x20] sm:$0xff]
    %v183 = vld [vmem:[#allocation8 + $0x28] sm:$0xff]
    %v184 = vld [vmem:[#allocation8 + $0x30] sm:$0xff]
    %v185 = vld [vmem:[#allocation8 + $0x38] sm:$0xff]
    %v186 = vld [vmem:[#allocation8 + $0x40] sm:$0xff]
    %v187 = vld [vmem:[#allocation8 + $0x48] sm:$0xff]
    %v188 = vld [vmem:[#allocation8 + $0x50] sm:$0xff]
    %v189 = vld [vmem:[#allocation8 + $0x58] sm:$0xff]
    %v190 = vld [vmem:[#allocation8 + $0x60] sm:$0xff]
    %v191 = vld [vmem:[#allocation8 + $0x68] sm:$0xff]
    %v192 = vld [vmem:[#allocation8 + $0x70] sm:$0xff]
    %v193 = vld [vmem:[#allocation8 + $0x78] sm:$0xff]
    %v194 = vld [vmem:[#allocation8 + $0x80] sm:$0xff]
    %v195 = vld [vmem:[#allocation8 + $0x88] sm:$0xff]
    %v196 = vld [vmem:[#allocation8 + $0x90] sm:$0xff]
    %v197 = vld [vmem:[#allocation8 + $0x98] sm:$0xff]
    %v198 = vld [vmem:[#allocation8 + $0xa0] sm:$0xff]
    %v199 = vld [vmem:[#allocation8 + $0xa8] sm:$0xff]
    %v200 = vld [vmem:[#allocation8 + $0xb0] sm:$0xff]
    %v201 = vld [vmem:[#allocation8 + $0xb8] sm:$0xff]
    %v202 = vld [vmem:[#allocation8 + $0xc0] sm:$0xff]
    %v203 = vld [vmem:[#allocation8 + $0xc8] sm:$0xff]
    %v204 = vld [vmem:[#allocation8 + $0xd0] sm:$0xff]
    %v205 = vld [vmem:[#allocation8 + $0xd8] sm:$0xff]
    %v206 = vld [vmem:[#allocation8 + $0xe0] sm:$0xff]
    %v207 = vld [vmem:[#allocation8 + $0xe8] sm:$0xff]
    %v208 = vld [vmem:[#allocation8 + $0xf0] sm:$0xff]
    %v209 = vld [vmem:[#allocation8 + $0xf8] sm:$0xff]
    %v210 = vld [vmem:[%s4] sm:$0x1]
    %v211 = vld [vmem:[#allocation2] sm:$0xff]
    %v212 = vld [vmem:[#allocation2 + $0x8] sm:$0xff]
    %v214 = vlaneseq
    %v215 = vshrl.u32 %v214, 7
    %v216 = vsub.s32 0, %v215
    %v217 = vrot.slane %v210, %v216
    %219 = vmatprep.subr.mxu0 0.0
    %220 = vmatpush1.msra.mxu0 %v178
    %221 = vmatprep.subr.mxu0 0.0
    %222 = vmatpush1.msra.mxu0 %v179
    %223 = vmatprep.subr.mxu0 0.0
    %224 = vmatpush1.msra.mxu0 %v180
    %225 = vmatprep.subr.mxu0 0.0
    %226 = vmatpush1.msra.mxu0 %v181
    %227 = vmatprep.subr.mxu0 0.0
    %228 = vmatpush1.msra.mxu0 %v182
    %229 = vmatprep.subr.mxu0 0.0
    %230 = vmatpush1.msra.mxu0 %v183
    %231 = vmatprep.subr.mxu0 0.0
    %232 = vmatpush1.msra.mxu0 %v184
    %233 = vmatprep.subr.mxu0 0.0
    %234 = vmatpush1.msra.mxu0 %v185
    %235 = vmatprep.subr.mxu0 0.0
    %236 = vmatpush1.msra.mxu0 %v186
    %237 = vmatprep.subr.mxu0 0.0
    %238 = vmatpush1.msra.mxu0 %v187
    %239 = vmatprep.subr.mxu0 0.0
    %240 = vmatpush1.msra.mxu0 %v188
    %241 = vmatprep.subr.mxu0 0.0
    %242 = vmatpush1.msra.mxu0 %v189
    %243 = vmatprep.subr.mxu0 0.0
    %244 = vmatpush1.msra.mxu0 %v190
    %245 = vmatprep.subr.mxu0 0.0
    %246 = vmatpush1.msra.mxu0 %v191
    %247 = vmatprep.subr.mxu0 0.0
    %248 = vmatpush1.msra.mxu0 %v192
    %249 = vmatprep.subr.mxu0 0.0
    %250 = vmatpush1.msra.mxu0 %v193
    %251 = vmatprep.subr.mxu0 0.0
    %252 = vmatpush1.msra.mxu0 %v194
    %253 = vmatprep.subr.mxu0 0.0
    %254 = vmatpush1.msra.mxu0 %v195
    %255 = vmatprep.subr.mxu0 0.0
    %256 = vmatpush1.msra.mxu0 %v196
    %257 = vmatprep.subr.mxu0 0.0
    %258 = vmatpush1.msra.mxu0 %v197
    %259 = vmatprep.subr.mxu0 0.0
    %260 = vmatpush1.msra.mxu0 %v198
    %261 = vmatprep.subr.mxu0 0.0
    %262 = vmatpush1.msra.mxu0 %v199
    %263 = vmatprep.subr.mxu0 0.0
    %264 = vmatpush1.msra.mxu0 %v200
    %265 = vmatprep.subr.mxu0 0.0
    %266 = vmatpush1.msra.mxu0 %v201
    %267 = vmatprep.subr.mxu0 0.0
    %268 = vmatpush1.msra.mxu0 %v202
    %269 = vmatprep.subr.mxu0 0.0
    %270 = vmatpush1.msra.mxu0 %v203
    %271 = vmatprep.subr.mxu0 0.0
    %272 = vmatpush1.msra.mxu0 %v204
    %273 = vmatprep.subr.mxu0 0.0
    %274 = vmatpush1.msra.mxu0 %v205
    %275 = vmatprep.subr.mxu0 0.0
    %276 = vmatpush1.msra.mxu0 %v206
    %277 = vmatprep.subr.mxu0 0.0
    %278 = vmatpush1.msra.mxu0 %v207
    %279 = vmatprep.subr.mxu0 0.0
    %280 = vmatpush1.msra.mxu0 %v208
    %281 = vmatprep.subr.mxu0 0.0
    %282 = vmatpush1.msra.mxu0 %v209
    %283 = vmatprep.mubr.f32.mxu0 %v212
    %284 = vmatmul.mubr.f32.gmra.mrb[0].mxu0 %v211
    %v285 = vpop.f32.mrb[0].mxu0
    %v286 = vadd.f32 %v217, %v285
    %v287 = vpop.f32.mrb[0].mxu0
    %288 = vdwg.mxu0
    %v289 = vmax.f32 %v286, 0.0
    %290 = vst [vmem:[#allocation2 + $0x10] sm:$0xff] %v289
    %v291 = vld [vmem:[#allocation2] sm:$0xff]
    %v292 = vld [vmem:[#allocation2 + $0x8] sm:$0xff]
    %v293 = vld [vmem:[#allocation2 + $0x10] sm:$0xff]
    %v294 = vld [vmem:[#allocation9] sm:$0xff]
    %v295 = vld [vmem:[#allocation9 + $0x8] sm:$0xff]
    %v296 = vld [vmem:[#allocation9 + $0x10] sm:$0xff]
    %v297 = vld [vmem:[#allocation9 + $0x18] sm:$0xff]
    %v298 = vld [vmem:[#allocation9 + $0x20] sm:$0xff]
    %v299 = vld [vmem:[#allocation9 + $0x28] sm:$0xff]
    %v300 = vld [vmem:[#allocation9 + $0x30] sm:$0xff]
    %v301 = vld [vmem:[#allocation9 + $0x38] sm:$0xff]
    %v302 = vld [vmem:[#allocation9 + $0x40] sm:$0xff]
    %v303 = vld [vmem:[#allocation9 + $0x48] sm:$0xff]
    %v304 = vld [vmem:[#allocation9 + $0x50] sm:$0xff]
    %v305 = vld [vmem:[#allocation9 + $0x58] sm:$0xff]
    %v306 = vld [vmem:[#allocation9 + $0x60] sm:$0xff]
    %v307 = vld [vmem:[#allocation9 + $0x68] sm:$0xff]
    %v308 = vld [vmem:[#allocation9 + $0x70] sm:$0xff]
    %v309 = vld [vmem:[#allocation9 + $0x78] sm:$0xff]
    %v310 = vld [vmem:[#allocation9 + $0x80] sm:$0xff]
    %v311 = vld [vmem:[#allocation9 + $0x88] sm:$0xff]
    %v312 = vld [vmem:[#allocation9 + $0x90] sm:$0xff]
    %v313 = vld [vmem:[#allocation9 + $0x98] sm:$0xff]
    %v314 = vld [vmem:[#allocation9 + $0xa0] sm:$0xff]
    %v315 = vld [vmem:[#allocation9 + $0xa8] sm:$0xff]
    %v316 = vld [vmem:[#allocation9 + $0xb0] sm:$0xff]
    %v317 = vld [vmem:[#allocation9 + $0xb8] sm:$0xff]
    %v318 = vld [vmem:[#allocation9 + $0xc0] sm:$0xff]
    %v319 = vld [vmem:[#allocation9 + $0xc8] sm:$0xff]
    %v320 = vld [vmem:[#allocation9 + $0xd0] sm:$0xff]
    %v321 = vld [vmem:[#allocation9 + $0xd8] sm:$0xff]
    %v322 = vld [vmem:[#allocation9 + $0xe0] sm:$0xff]
    %v323 = vld [vmem:[#allocation9 + $0xe8] sm:$0xff]
    %v324 = vld [vmem:[#allocation9 + $0xf0] sm:$0xff]
    %v325 = vld [vmem:[#allocation9 + $0xf8] sm:$0xff]
    %v326 = vld [vmem:[#allocation9 + $0x100] sm:$0xff]
    %v327 = vld [vmem:[#allocation9 + $0x108] sm:$0xff]
    %v328 = vld [vmem:[#allocation9 + $0x110] sm:$0xff]
    %v329 = vld [vmem:[#allocation9 + $0x118] sm:$0xff]
    %v330 = vld [vmem:[#allocation9 + $0x120] sm:$0xff]
    %v331 = vld [vmem:[#allocation9 + $0x128] sm:$0xff]
    %v332 = vld [vmem:[#allocation9 + $0x130] sm:$0xff]
    %v333 = vld [vmem:[#allocation9 + $0x138] sm:$0xff]
    %v334 = vld [vmem:[#allocation9 + $0x140] sm:$0xff]
    %v335 = vld [vmem:[#allocation9 + $0x148] sm:$0xff]
    %v336 = vld [vmem:[#allocation9 + $0x150] sm:$0xff]
    %v337 = vld [vmem:[#allocation9 + $0x158] sm:$0xff]
    %v338 = vld [vmem:[#allocation9 + $0x160] sm:$0xff]
    %v339 = vld [vmem:[#allocation9 + $0x168] sm:$0xff]
    %v340 = vld [vmem:[#allocation9 + $0x170] sm:$0xff]
    %v341 = vld [vmem:[#allocation9 + $0x178] sm:$0xff]
    %v342 = vld [vmem:[%s6] sm:$0x1]
    %v344 = vlaneseq
    %v345 = vshrl.u32 %v344, 7
    %v346 = vsub.s32 0, %v345
    %v347 = vrot.slane %v342, %v346
    %349 = vmatprep.subr.mxu0 0.0
    %350 = vmatpush1.msra.mxu0 %v294
    %351 = vmatprep.subr.mxu0 0.0
    %352 = vmatpush1.msra.mxu0 %v295
    %353 = vmatprep.subr.mxu0 0.0
    %354 = vmatpush1.msra.mxu0 %v296
    %355 = vmatprep.subr.mxu0 0.0
    %356 = vmatpush1.msra.mxu0 %v297
    %357 = vmatprep.subr.mxu0 0.0
    %358 = vmatpush1.msra.mxu0 %v298
    %359 = vmatprep.subr.mxu0 0.0
    %360 = vmatpush1.msra.mxu0 %v299
    %361 = vmatprep.subr.mxu0 0.0
    %362 = vmatpush1.msra.mxu0 %v300
    %363 = vmatprep.subr.mxu0 0.0
    %364 = vmatpush1.msra.mxu0 %v301
    %365 = vmatprep.subr.mxu0 0.0
    %366 = vmatpush1.msra.mxu0 %v302
    %367 = vmatprep.subr.mxu0 0.0
    %368 = vmatpush1.msra.mxu0 %v303
    %369 = vmatprep.subr.mxu0 0.0
    %370 = vmatpush1.msra.mxu0 %v304
    %371 = vmatprep.subr.mxu0 0.0
    %372 = vmatpush1.msra.mxu0 %v305
    %373 = vmatprep.subr.mxu0 0.0
    %374 = vmatpush1.msra.mxu0 %v306
    %375 = vmatprep.subr.mxu0 0.0
    %376 = vmatpush1.msra.mxu0 %v307
    %377 = vmatprep.subr.mxu0 0.0
    %378 = vmatpush1.msra.mxu0 %v308
    %379 = vmatprep.subr.mxu0 0.0
    %380 = vmatpush1.msra.mxu0 %v309
    %381 = vmatprep.subr.mxu0 0.0
    %382 = vmatpush1.msra.mxu0 %v310
    %383 = vmatprep.subr.mxu0 0.0
    %384 = vmatpush1.msra.mxu0 %v311
    %385 = vmatprep.subr.mxu0 0.0
    %386 = vmatpush1.msra.mxu0 %v312
    %387 = vmatprep.subr.mxu0 0.0
    %388 = vmatpush1.msra.mxu0 %v313
    %389 = vmatprep.subr.mxu0 0.0
    %390 = vmatpush1.msra.mxu0 %v314
    %391 = vmatprep.subr.mxu0 0.0
    %392 = vmatpush1.msra.mxu0 %v315
    %393 = vmatprep.subr.mxu0 0.0
    %394 = vmatpush1.msra.mxu0 %v316
    %395 = vmatprep.subr.mxu0 0.0
    %396 = vmatpush1.msra.mxu0 %v317
    %397 = vmatprep.subr.mxu0 0.0
    %398 = vmatpush1.msra.mxu0 %v318
    %399 = vmatprep.subr.mxu0 0.0
    %400 = vmatpush1.msra.mxu0 %v319
    %401 = vmatprep.subr.mxu0 0.0
    %402 = vmatpush1.msra.mxu0 %v320
    %403 = vmatprep.subr.mxu0 0.0
    %404 = vmatpush1.msra.mxu0 %v321
    %405 = vmatprep.subr.mxu0 0.0
    %406 = vmatpush1.msra.mxu0 %v322
    %407 = vmatprep.subr.mxu0 0.0
    %408 = vmatpush1.msra.mxu0 %v323
    %409 = vmatprep.subr.mxu0 0.0
    %410 = vmatpush1.msra.mxu0 %v324
    %411 = vmatprep.subr.mxu0 0.0
    %412 = vmatpush1.msra.mxu0 %v325
    %413 = vmatprep.mubr.f32.mxu0 %v292
    %414 = vmatmul.mubr.f32.gmra.mrb[0].mxu0 %v291
    %v415 = vpop.f32.mrb[0].mxu0
    %v416 = vadd.f32 %v347, %v415
    %v417 = vpop.f32.mrb[0].mxu0
    %418 = vdwg.mxu0
    %419 = vmatprep.subr.mxu0 0.0
    %420 = vmatpush1.msra.mxu0 %v326
    %421 = vmatprep.subr.mxu0 0.0
    %422 = vmatpush1.msra.mxu0 %v327
    %423 = vmatprep.subr.mxu0 0.0
    %424 = vmatpush1.msra.mxu0 %v328
    %425 = vmatprep.subr.mxu0 0.0
    %426 = vmatpush1.msra.mxu0 %v329
    %427 = vmatprep.subr.mxu0 0.0
    %428 = vmatpush1.msra.mxu0 %v330
    %429 = vmatprep.subr.mxu0 0.0
    %430 = vmatpush1.msra.mxu0 %v331
    %431 = vmatprep.subr.mxu0 0.0
    %432 = vmatpush1.msra.mxu0 %v332
    %433 = vmatprep.subr.mxu0 0.0
    %434 = vmatpush1.msra.mxu0 %v333
    %435 = vmatprep.subr.mxu0 0.0
    %436 = vmatpush1.msra.mxu0 %v334
    %437 = vmatprep.subr.mxu0 0.0
    %438 = vmatpush1.msra.mxu0 %v335
    %439 = vmatprep.subr.mxu0 0.0
    %440 = vmatpush1.msra.mxu0 %v336
    %441 = vmatprep.subr.mxu0 0.0
    %442 = vmatpush1.msra.mxu0 %v337
    %443 = vmatprep.subr.mxu0 0.0
    %444 = vmatpush1.msra.mxu0 %v338
    %445 = vmatprep.subr.mxu0 0.0
    %446 = vmatpush1.msra.mxu0 %v339
    %447 = vmatprep.subr.mxu0 0.0
    %448 = vmatpush1.msra.mxu0 %v340
    %449 = vmatprep.subr.mxu0 0.0
    %450 = vmatpush1.msra.mxu0 %v341
    %451 = vmatprep.subr.mxu0 0.0
    %452 = vmatpush1.msra.mxu0 0.0
    %453 = vmatprep.subr.mxu0 0.0
    %454 = vmatpush1.msra.mxu0 0.0
    %455 = vmatprep.subr.mxu0 0.0
    %456 = vmatpush1.msra.mxu0 0.0
    %457 = vmatprep.subr.mxu0 0.0
    %458 = vmatpush1.msra.mxu0 0.0
    %459 = vmatprep.subr.mxu0 0.0
    %460 = vmatpush1.msra.mxu0 0.0
    %461 = vmatprep.subr.mxu0 0.0
    %462 = vmatpush1.msra.mxu0 0.0
    %463 = vmatprep.subr.mxu0 0.0
    %464 = vmatpush1.msra.mxu0 0.0
    %465 = vmatprep.subr.mxu0 0.0
    %466 = vmatpush1.msra.mxu0 0.0
    %467 = vmatprep.subr.mxu0 0.0
    %468 = vmatpush1.msra.mxu0 0.0
    %469 = vmatprep.subr.mxu0 0.0
    %470 = vmatpush1.msra.mxu0 0.0
    %471 = vmatprep.subr.mxu0 0.0
    %472 = vmatpush1.msra.mxu0 0.0
    %473 = vmatprep.subr.mxu0 0.0
    %474 = vmatpush1.msra.mxu0 0.0
    %475 = vmatprep.subr.mxu0 0.0
    %476 = vmatpush1.msra.mxu0 0.0
    %477 = vmatprep.subr.mxu0 0.0
    %478 = vmatpush1.msra.mxu0 0.0
    %479 = vmatprep.subr.mxu0 0.0
    %480 = vmatpush1.msra.mxu0 0.0
    %481 = vmatprep.subr.mxu0 0.0
    %482 = vmatpush1.msra.mxu0 0.0
    %483 = vmatprep.mubr.f32.mxu0 0.0
    %484 = vmatmul.mubr.f32.gmra.mrb[0].mxu0 %v293
    %v485 = vpop.f32.mrb[0].mxu0
    %v486 = vadd.f32 %v416, %v485
    %v487 = vpop.f32.mrb[0].mxu0
    %488 = vdwg.mxu0
    %v489 = vsub.f32 0.0, %v486
    %v490 = vmul.f32 %v489, 1.442695
    %v491 = vpow.pop %v490
    %v492 = vadd.f32 %v491, 1.0
    %v493 = vrcp.pop %v492
    %v494 = vmul.f32 1.0, %v493
    %495 = vst [vmem:[#allocation11] sm:$0xff] %v494
    // Predicated region
    $region46: #{tpu_custom_call.1} parent=1 // pred_check
      _
    $region47: #{tpu_custom_call.1} parent=1 // pred_check_branch
      %497 = sbr.rel (0) target = $region49
    $region48: #{tpu_custom_call.1} parent=1 // pred_region
      %s499 = ssub.s32 128, 128
      %500 = vsyncadd [#allocation5], %s499
      %s502 = sshll.u32 [#allocation11], 4
      %s503 = int_to_ptr.vmem [resolvable:$true] %s502
      %505 = dma.vmem_to_hbm [thread:$0]  %s503, 128, %s7, [#allocation5]
    $region49: #{tpu_custom_call.1} parent=1 // pred_fallthru
      _
    // Predicated region
    $region50: #{tpu_custom_call.1} parent=1 // pred_check
      _
    $region51: #{tpu_custom_call.1} parent=1 // pred_check_branch
      %507 = sbr.rel (0) target = $region53
    $region52: #{tpu_custom_call.1} parent=1 // pred_region
      %508 = dma.done [#allocation5], 128
    $region53: #{tpu_custom_call.1} parent=1 // pred_fallthru
      _
    %509 = vsyncpa [#allocation4], 1
    %510 = vsyncpa [#allocation7], 1
    %511 = vsyncpa [#allocation10], 1
    %512 = vsyncpa [#allocation5], 1

</llo_original>
